<compile_context>
chip_gen: v5e
topology: v5e:2x2
jax: 0.10.0
libtpu: 0.0.40
codegen_flags: <defaults>
</compile_context>

<pallas_src>
import jax
import jax.numpy as jnp
from jax.experimental import pallas as pl
from jax.experimental.pallas import tpu as pltpu

NUM_STATES = 4     # CartPole-v1 observation dim
NUM_ACTIONS = 2    # CartPole-v1 action dim
H1, H2 = 64, 256
K1 = 8             # layer-1 contraction dim, zero-padded 4 -> 8 for clean tiling


def mlp_kernel(x_ref, w1_ref, w2_ref, w3_ref, b1_ref, b2_ref, b3_ref, o_ref):
    # Everything is feature-major (transposed): activations are (features, TM).
    x = x_ref[...].astype(jnp.bfloat16)                      # (K1, TM)

    # ---- layer 1: (64, 8) @ (8, TM) on the MXU, bf16 operands / f32 acc ----
    h1 = jnp.dot(w1_ref[...], x, preferred_element_type=jnp.float32)
    h1 = jnp.maximum(h1 + b1_ref[...], 0.0)                  # (64, TM) f32

    # ---- layer 2: (256, 64) @ (64, TM) ----
    h2 = jnp.dot(w2_ref[...], h1.astype(jnp.bfloat16),
                 preferred_element_type=jnp.float32)
    h2 = jnp.maximum(h2 + b2_ref[...], 0.0)                  # (256, TM) f32

    # ---- layer 3: (2, 256) @ (256, TM) -> lane-dense (2, TM) f32 store ----
    o = jnp.dot(w3_ref[...], h2.astype(jnp.bfloat16),
                preferred_element_type=jnp.float32)
    o_ref[...] = (o + b3_ref[...]).astype(o_ref.dtype)


def pack_params(params):
    """One-time repack into the transposed layout the kernel consumes."""
    w1, b1, w2, b2, w3, b3 = params
    w1t = jnp.zeros((H1, K1), jnp.bfloat16)
    w1t = w1t.at[:, :NUM_STATES].set(w1.T.astype(jnp.bfloat16))   # (64, 8)
    w2t = w2.T.astype(jnp.bfloat16)                               # (256, 64)
    w3t = w3.T.astype(jnp.bfloat16)                               # (2, 256)
    b1c = b1.reshape(H1, 1).astype(jnp.float32)                   # (64, 1)
    b2c = b2.reshape(H2, 1).astype(jnp.float32)                   # (256, 1)
    b3c = b3.reshape(NUM_ACTIONS, 1).astype(jnp.float32)          # (2, 1)
    return w1t, w2t, w3t, b1c, b2c, b3c


def _choose_tile(batch):
    # Big tiles amortize per-grid-step overhead; keep >= 2 grid steps whenever
    # padded >= 256 so both of v7x's TensorCores get work.
    if batch >= 2048:
        return 512
    if batch >= 512:
        return 256
    return 128


@jax.jit
def mlp_forward(x, w1t, w2t, w3t, b1c, b2c, b3c):
    batch = x.shape[0]
    tm = _choose_tile(batch)
    padded = pl.cdiv(batch, tm) * tm
    grid_m = padded // tm

    # Feature-major input, K zero-padded 4 -> 8; lane-dense (8, TM) blocks.
    xt = jnp.zeros((K1, padded), jnp.float32)
    xt = xt.at[:NUM_STATES, :batch].set(x.T)

    flops = 2 * padded * (K1 * H1 + H1 * H2 + H2 * NUM_ACTIONS)
    bytes_accessed = (xt.size * 4
                      + (w1t.size + w2t.size + w3t.size) * 2
                      + (b1c.size + b2c.size + b3c.size) * 4
                      + NUM_ACTIONS * padded * 4)

    def const(shape):
        # Constant block index -> parameter stays VMEM-resident for the whole grid.
        return pl.BlockSpec(shape, lambda i: (0, 0))

    out_t = pl.pallas_call(
        mlp_kernel,
        out_shape=jax.ShapeDtypeStruct((NUM_ACTIONS, padded), jnp.float32),
        grid_spec=pltpu.PrefetchScalarGridSpec(
            num_scalar_prefetch=0,
            grid=(grid_m,),
            in_specs=[
                pl.BlockSpec((K1, tm), lambda i: (0, i)),   # x (transposed)
                const((H1, K1)),                            # w1^T (zero-padded K)
                const((H2, H1)),                            # w2^T
                const((NUM_ACTIONS, H2)),                   # w3^T
                const((H1, 1)),                             # b1
                const((H2, 1)),                             # b2
                const((NUM_ACTIONS, 1)),                    # b3
            ],
            out_specs=pl.BlockSpec((NUM_ACTIONS, tm), lambda i: (0, i)),
        ),
        compiler_params=pltpu.CompilerParams(
            dimension_semantics=("parallel",)),   # shards batch grid on v7x's 2 TCs
        cost_estimate=pl.CostEstimate(flops=flops, transcendentals=0,
                                      bytes_accessed=bytes_accessed),
    )(xt, w1t, w2t, w3t, b1c, b2c, b3c)

    # (2, padded) -> (batch, 2); tiny wrapper-side transpose (layout plumbing).
    return out_t[:, :batch].T


def init_params(key):
    # Deterministic init mimicking nn.Linear's uniform(-1/sqrt(fan_in), +1/sqrt(fan_in)).
    ks = jax.random.split(key, 6)

    def lin(kw, kb, fan_in, fan_out):
        bound = 1.0 / jnp.sqrt(float(fan_in))
        w = jax.random.uniform(kw, (fan_in, fan_out), jnp.float32, -bound, bound)
        b = jax.random.uniform(kb, (1, fan_out), jnp.float32, -bound, bound)
        return w, b

    w1, b1 = lin(ks[0], ks[1], NUM_STATES, H1)
    w2, b2 = lin(ks[2], ks[3], H1, H2)
    w3, b3 = lin(ks[4], ks[5], H2, NUM_ACTIONS)
    return (w1, b1, w2, b2, w3, b3)


def ref_forward(x, params):
    # Same math as the PyTorch module, mirroring the kernel's bf16 MXU operands
    # with f32 accumulation on all three layers.
    w1, b1, w2, b2, w3, b3 = params
    bf = lambda a: a.astype(jnp.bfloat16)
    h1 = jnp.maximum(jnp.dot(bf(x), bf(w1),
                             preferred_element_type=jnp.float32) + b1, 0.0)
    h2 = jnp.maximum(jnp.dot(bf(h1), bf(w2),
                             preferred_element_type=jnp.float32) + b2, 0.0)
    return jnp.dot(bf(h2), bf(w3), preferred_element_type=jnp.float32) + b3


# TODO(synk): the gym environment / RL rollout+training loop has no Pallas
# equivalent; only Model.forward is implemented here.

if __name__ == "__main__":
    key = jax.random.PRNGKey(0)
    kx, kp = jax.random.split(key)
    batch = 256                      # -> 2 batch tiles of 128 rows (2 grid steps)
    x = jax.random.normal(kx, (batch, NUM_STATES), jnp.float32)
    params = init_params(kp)
    packed = pack_params(params)     # done once; reused across every forward call

    out = mlp_forward(x, *packed)
    jax.block_until_ready(out)

    ref = ref_forward(x, params)
    assert out.shape == (batch, NUM_ACTIONS)
    assert jnp.allclose(out, ref, atol=1e-3, rtol=1e-3), (
        float(jnp.max(jnp.abs(out - ref))))
    print("KERNEL_OK")
</pallas_src>

<mosaic_0001>
module attributes {stable_mosaic.version = 11 : i64} {
  func.func @mlp_kernel(%arg0: i32, %arg1: memref<8x128xf32, #tpu.memory_space<vmem>>, %arg2: memref<64x8xbf16, #tpu.memory_space<vmem>>, %arg3: memref<256x64xbf16, #tpu.memory_space<vmem>>, %arg4: memref<2x256xbf16, #tpu.memory_space<vmem>>, %arg5: memref<64x1xf32, #tpu.memory_space<vmem>>, %arg6: memref<256x1xf32, #tpu.memory_space<vmem>>, %arg7: memref<2x1xf32, #tpu.memory_space<vmem>>, %arg8: memref<2x128xf32, #tpu.memory_space<vmem>>) attributes {dimension_semantics = [#tpu.dimension_semantics<parallel>], iteration_bounds = array<i64: 2>, scalar_prefetch = 0 : i64, scratch_operands = 0 : i64, tpu.core_type = #tpu.core_type<tc>, window_params = [{transform_indices = @transform_0, window_bounds = array<i64: 8, 128>}, {pipeline_mode = #tpu.pipeline_mode<synchronous>, transform_indices = @transform_1, window_bounds = array<i64: 64, 8>}, {pipeline_mode = #tpu.pipeline_mode<synchronous>, transform_indices = @transform_2, window_bounds = array<i64: 256, 64>}, {pipeline_mode = #tpu.pipeline_mode<synchronous>, transform_indices = @transform_3, window_bounds = array<i64: 2, 256>}, {pipeline_mode = #tpu.pipeline_mode<synchronous>, transform_indices = @transform_4, window_bounds = array<i64: 64, 1>}, {pipeline_mode = #tpu.pipeline_mode<synchronous>, transform_indices = @transform_5, window_bounds = array<i64: 256, 1>}, {pipeline_mode = #tpu.pipeline_mode<synchronous>, transform_indices = @transform_6, window_bounds = array<i64: 2, 1>}, {transform_indices = @transform_7, window_bounds = array<i64: 2, 128>}]} {
    %c0 = arith.constant 0 : index
    %c0_0 = arith.constant 0 : index
    %0 = vector.load %arg1[%c0, %c0_0] : memref<8x128xf32, #tpu.memory_space<vmem>>, vector<8x128xf32>
    %1 = arith.truncf %0 : vector<8x128xf32> to vector<8x128xbf16>
    %c0_1 = arith.constant 0 : index
    %c0_2 = arith.constant 0 : index
    %2 = vector.load %arg2[%c0_1, %c0_2] : memref<64x8xbf16, #tpu.memory_space<vmem>>, vector<64x8xbf16>
    %cst = arith.constant dense<0.000000e+00> : vector<64x128xf32>
    %3 = tpu.matmul %2, %1, %cst {dimension_numbers = #tpu.dot_dimension_numbers<[1], [0], [0], [1], [0, 0, 1, 1], [], []>} : vector<64x8xbf16>, vector<8x128xbf16>, vector<64x128xf32> -> vector<64x128xf32>
    %c0_3 = arith.constant 0 : index
    %c0_4 = arith.constant 0 : index
    %4 = vector.load %arg5[%c0_3, %c0_4] : memref<64x1xf32, #tpu.memory_space<vmem>>, vector<64x1xf32>
    %5 = vector.broadcast %4 : vector<64x1xf32> to vector<64x128xf32>
    %6 = arith.addf %3, %5 : vector<64x128xf32>
    %cst_5 = arith.constant 0.000000e+00 : f32
    %7 = vector.broadcast %cst_5 : f32 to vector<64x128xf32>
    %8 = arith.maximumf %6, %7 : vector<64x128xf32>
    %c0_6 = arith.constant 0 : index
    %c0_7 = arith.constant 0 : index
    %9 = vector.load %arg3[%c0_6, %c0_7] : memref<256x64xbf16, #tpu.memory_space<vmem>>, vector<256x64xbf16>
    %10 = arith.truncf %8 : vector<64x128xf32> to vector<64x128xbf16>
    %cst_8 = arith.constant dense<0.000000e+00> : vector<256x128xf32>
    %11 = tpu.matmul %9, %10, %cst_8 {dimension_numbers = #tpu.dot_dimension_numbers<[1], [0], [0], [1], [0, 0, 1, 1], [], []>} : vector<256x64xbf16>, vector<64x128xbf16>, vector<256x128xf32> -> vector<256x128xf32>
    %c0_9 = arith.constant 0 : index
    %c0_10 = arith.constant 0 : index
    %12 = vector.load %arg6[%c0_9, %c0_10] : memref<256x1xf32, #tpu.memory_space<vmem>>, vector<256x1xf32>
    %13 = vector.broadcast %12 : vector<256x1xf32> to vector<256x128xf32>
    %14 = arith.addf %11, %13 : vector<256x128xf32>
    %cst_11 = arith.constant 0.000000e+00 : f32
    %15 = vector.broadcast %cst_11 : f32 to vector<256x128xf32>
    %16 = arith.maximumf %14, %15 : vector<256x128xf32>
    %c0_12 = arith.constant 0 : index
    %c0_13 = arith.constant 0 : index
    %17 = vector.load %arg4[%c0_12, %c0_13] : memref<2x256xbf16, #tpu.memory_space<vmem>>, vector<2x256xbf16>
    %18 = arith.truncf %16 : vector<256x128xf32> to vector<256x128xbf16>
    %cst_14 = arith.constant dense<0.000000e+00> : vector<2x128xf32>
    %19 = tpu.matmul %17, %18, %cst_14 {dimension_numbers = #tpu.dot_dimension_numbers<[1], [0], [0], [1], [0, 0, 1, 1], [], []>} : vector<2x256xbf16>, vector<256x128xbf16>, vector<2x128xf32> -> vector<2x128xf32>
    %c0_15 = arith.constant 0 : index
    %c0_16 = arith.constant 0 : index
    %20 = vector.load %arg7[%c0_15, %c0_16] : memref<2x1xf32, #tpu.memory_space<vmem>>, vector<2x1xf32>
    %21 = vector.broadcast %20 : vector<2x1xf32> to vector<2x128xf32>
    %22 = arith.addf %19, %21 : vector<2x128xf32>
    %c0_17 = arith.constant 0 : index
    %c0_18 = arith.constant 0 : index
    %23 = vector.load %arg8[%c0_17, %c0_18] : memref<2x128xf32, #tpu.memory_space<vmem>>, vector<2x128xf32>
    tpu.vector_store %arg8[%c0_17, %c0_18], %22 {strides = array<i32>} : memref<2x128xf32, #tpu.memory_space<vmem>>, vector<2x128xf32>,
    return
  }
  func.func @transform_0(%arg0: i32) -> (i32, i32) {
    %c0_i32 = arith.constant 0 : i32
    %c0_i32_0 = arith.constant 0 : i32
    return %c0_i32, %arg0 : i32, i32
  }
  func.func @transform_1(%arg0: i32) -> (i32, i32) {
    %c0_i32 = arith.constant 0 : i32
    %c0_i32_0 = arith.constant 0 : i32
    %c0_i32_1 = arith.constant 0 : i32
    return %c0_i32, %c0_i32_0 : i32, i32
  }
  func.func @transform_2(%arg0: i32) -> (i32, i32) {
    %c0_i32 = arith.constant 0 : i32
    %c0_i32_0 = arith.constant 0 : i32
    %c0_i32_1 = arith.constant 0 : i32
    return %c0_i32, %c0_i32_0 : i32, i32
  }
  func.func @transform_3(%arg0: i32) -> (i32, i32) {
    %c0_i32 = arith.constant 0 : i32
    %c0_i32_0 = arith.constant 0 : i32
    %c0_i32_1 = arith.constant 0 : i32
    return %c0_i32, %c0_i32_0 : i32, i32
  }
  func.func @transform_4(%arg0: i32) -> (i32, i32) {
    %c0_i32 = arith.constant 0 : i32
    %c0_i32_0 = arith.constant 0 : i32
    %c0_i32_1 = arith.constant 0 : i32
    return %c0_i32, %c0_i32_0 : i32, i32
  }
  func.func @transform_5(%arg0: i32) -> (i32, i32) {
    %c0_i32 = arith.constant 0 : i32
    %c0_i32_0 = arith.constant 0 : i32
    %c0_i32_1 = arith.constant 0 : i32
    return %c0_i32, %c0_i32_0 : i32, i32
  }
  func.func @transform_6(%arg0: i32) -> (i32, i32) {
    %c0_i32 = arith.constant 0 : i32
    %c0_i32_0 = arith.constant 0 : i32
    %c0_i32_1 = arith.constant 0 : i32
    return %c0_i32, %c0_i32_0 : i32, i32
  }
  func.func @transform_7(%arg0: i32) -> (i32, i32) {
    %c0_i32 = arith.constant 0 : i32
    %c0_i32_0 = arith.constant 0 : i32
    return %c0_i32, %arg0 : i32, i32
  }
}

</mosaic_0001>

<llo_original>
// kernel: mlp_forward.1
$region0: #{mlp_forward.1}
  #allocation0 [shape = 'u32[]', space=smem, size = 0x4, offset = 0x4, fixed_abs, tag = 'smem constant byte address 0x4 - core index']
  #allocation1 [shape = 'u32[72,128]{1,0:T(1,128)}', space=vmem, size = 0x9000, scoped, tag = 'internal scratch']
  %s0 = inlined_call_operand.vmem [shape: f32[8,256], index: 0, kind: input, shape index: {}]
  %s1 = inlined_call_operand.vmem [shape: bf16[64,8], index: 1, kind: input, shape index: {}]
  %s2 = inlined_call_operand.vmem [shape: bf16[256,64], index: 2, kind: input, shape index: {}]
  %s3 = inlined_call_operand.vmem [shape: bf16[2,256], index: 3, kind: input, shape index: {}]
  %s4 = inlined_call_operand.vmem [shape: f32[64,1], index: 4, kind: input, shape index: {}]
  %s5 = inlined_call_operand.vmem [shape: f32[256,1], index: 5, kind: input, shape index: {}]
  %s6 = inlined_call_operand.vmem [shape: f32[2,1], index: 6, kind: input, shape index: {}]
  %s7 = inlined_call_operand.hbm [shape: f32[2,256], index: 7, kind: output, shape index: {}]
  %s8 = sld [smem:[#allocation0]]
  $region61: #{mlp_forward.1} parent=0
    _
  %s10 = ssub.s32 1, %s8
  %s11 = scalar_select 0, %s10, %s8
  $region1: #{mlp_forward.1} parent=0
    #allocation2 [shape = 'u8[2048]{0}', space=vmem, size = 0x800, scoped, tag = 'output window, operand 0']
    #allocation3 [shape = 's32[2]{0}', space=sflag, size = 0x8, scoped, tag = 'scoped memory for mlp_forward.1']
    %12 = vsyncpa [#allocation3], 0
    %s13 = scalar_lea.sflag [#allocation3], 1
    %14 = vsyncpa %s13, 0
    loop: start=0, step=1, limit=4
    $region2: #{mlp_forward.1} parent=1 // loop_pre_header
      _
    $region3: #{mlp_forward.1} parent=1 // loop_header
      %s16 = sphi 0, %s20
      %p17 = scmp.ge.s32.totalorder %s16, 4
      %s26 = sphi 0, %s28
      %s29 = sphi 0, %s26
      %s30 = sphi 0, %s29
      %s46 = sphi 0, %s30
      %s50 = sphi 0, %s50
      %s52 = sphi 0, %s50
      %s53 = sphi 0, %s52
      %s67 = sphi 0, %s53
      %s71 = sphi 0, %s71
      %s73 = sphi 0, %s71
      %s74 = sphi 0, %s73
      %s88 = sphi 0, %s74
      %s92 = sphi 0, %s92
      %s94 = sphi 0, %s92
      %s95 = sphi 0, %s94
      %s109 = sphi 0, %s95
      %s113 = sphi 0, %s113
      %s115 = sphi 0, %s113
      %s116 = sphi 0, %s115
      %s130 = sphi 0, %s116
      %s134 = sphi 0, %s134
      %s136 = sphi 0, %s134
      %s137 = sphi 0, %s136
      %s151 = sphi 0, %s137
      %s155 = sphi 0, %s155
      %s157 = sphi 0, %s155
      %s158 = sphi 0, %s157
      %s172 = sphi 0, %s158
      %s178 = sphi 0, %s180
      %s181 = sphi 0, %s178
      %s182 = sphi 0, %s181
      %s198 = sphi 0, %s182
    $region4: #{mlp_forward.1} parent=1 // loop_header_branch
      %19 = sbr.rel (%p17) target = $region8
    $region5: #{mlp_forward.1} parent=1 // loop_body
      %s21 = ssub.s32 %s16, 1
      %s22 = ssub.s32 %s16, 2
      %s23 = sadd.s32 %s16, 1
      %s24 = ssub.s32 %s16, %s23
      %p25 = scmp.eq.s32.totalorder %s24, 0
      %s27 = sadd.s32 %s26, 1
      %s28 = scalar_select %p25, %s26, %s27
      %p31 = pneg %p25
      %p32 = scmp.eq.s32.totalorder %s16, 1
      %p33 = por %p31, %p32
      %p34 = scmp.ne.s32.totalorder %s26, %s29
      %p35 = scmp.eq.s32.totalorder %s16, 0
      %p36 = por %p34, %p35
      %p37 = scmp.ne.s32.totalorder %s26, %s29
      %p38 = scmp.eq.s32.totalorder %s21, 1
      %p39 = por %p37, %p38
      %p40 = scmp.ne.s32.totalorder %s29, %s30
      %p41 = scmp.eq.s32.totalorder %s21, 0
      %p42 = por %p40, %p41
      %p43 = scmp.ne.s32.totalorder %s29, %s30
      %p44 = scmp.eq.s32.totalorder %s22, 1
      %p45 = por %p43, %p44
      %p47 = scmp.ne.s32.totalorder %s30, %s46
      %p48 = scmp.eq.s32.totalorder %s22, 0
      %p49 = por %p47, %p48
      %s51 = sadd.s32 %s50, 1
      %p54 = scmp.eq.s32.totalorder %s16, 1
      %p55 = scmp.ne.s32.totalorder %s50, %s52
      %p56 = scmp.eq.s32.totalorder %s16, 0
      %p57 = por %p55, %p56
      %p58 = scmp.ne.s32.totalorder %s50, %s52
      %p59 = scmp.eq.s32.totalorder %s21, 1
      %p60 = por %p58, %p59
      %p61 = scmp.ne.s32.totalorder %s52, %s53
      %p62 = scmp.eq.s32.totalorder %s21, 0
      %p63 = por %p61, %p62
      %p64 = scmp.ne.s32.totalorder %s52, %s53
      %p65 = scmp.eq.s32.totalorder %s22, 1
      %p66 = por %p64, %p65
      %p68 = scmp.ne.s32.totalorder %s53, %s67
      %p69 = scmp.eq.s32.totalorder %s22, 0
      %p70 = por %p68, %p69
      %s72 = sadd.s32 %s71, 1
      %p75 = scmp.eq.s32.totalorder %s16, 1
      %p76 = scmp.ne.s32.totalorder %s71, %s73
      %p77 = scmp.eq.s32.totalorder %s16, 0
      %p78 = por %p76, %p77
      %p79 = scmp.ne.s32.totalorder %s71, %s73
      %p80 = scmp.eq.s32.totalorder %s21, 1
      %p81 = por %p79, %p80
      %p82 = scmp.ne.s32.totalorder %s73, %s74
      %p83 = scmp.eq.s32.totalorder %s21, 0
      %p84 = por %p82, %p83
      %p85 = scmp.ne.s32.totalorder %s73, %s74
      %p86 = scmp.eq.s32.totalorder %s22, 1
      %p87 = por %p85, %p86
      %p89 = scmp.ne.s32.totalorder %s74, %s88
      %p90 = scmp.eq.s32.totalorder %s22, 0
      %p91 = por %p89, %p90
      %s93 = sadd.s32 %s92, 1
      %p96 = scmp.eq.s32.totalorder %s16, 1
      %p97 = scmp.ne.s32.totalorder %s92, %s94
      %p98 = scmp.eq.s32.totalorder %s16, 0
      %p99 = por %p97, %p98
      %p100 = scmp.ne.s32.totalorder %s92, %s94
      %p101 = scmp.eq.s32.totalorder %s21, 1
      %p102 = por %p100, %p101
      %p103 = scmp.ne.s32.totalorder %s94, %s95
      %p104 = scmp.eq.s32.totalorder %s21, 0
      %p105 = por %p103, %p104
      %p106 = scmp.ne.s32.totalorder %s94, %s95
      %p107 = scmp.eq.s32.totalorder %s22, 1
      %p108 = por %p106, %p107
      %p110 = scmp.ne.s32.totalorder %s95, %s109
      %p111 = scmp.eq.s32.totalorder %s22, 0
      %p112 = por %p110, %p111
      %s114 = sadd.s32 %s113, 1
      %p117 = scmp.eq.s32.totalorder %s16, 1
      %p118 = scmp.ne.s32.totalorder %s113, %s115
      %p119 = scmp.eq.s32.totalorder %s16, 0
      %p120 = por %p118, %p119
      %p121 = scmp.ne.s32.totalorder %s113, %s115
      %p122 = scmp.eq.s32.totalorder %s21, 1
      %p123 = por %p121, %p122
      %p124 = scmp.ne.s32.totalorder %s115, %s116
      %p125 = scmp.eq.s32.totalorder %s21, 0
      %p126 = por %p124, %p125
      %p127 = scmp.ne.s32.totalorder %s115, %s116
      %p128 = scmp.eq.s32.totalorder %s22, 1
      %p129 = por %p127, %p128
      %p131 = scmp.ne.s32.totalorder %s116, %s130
      %p132 = scmp.eq.s32.totalorder %s22, 0
      %p133 = por %p131, %p132
      %s135 = sadd.s32 %s134, 1
      %p138 = scmp.eq.s32.totalorder %s16, 1
      %p139 = scmp.ne.s32.totalorder %s134, %s136
      %p140 = scmp.eq.s32.totalorder %s16, 0
      %p141 = por %p139, %p140
      %p142 = scmp.ne.s32.totalorder %s134, %s136
      %p143 = scmp.eq.s32.totalorder %s21, 1
      %p144 = por %p142, %p143
      %p145 = scmp.ne.s32.totalorder %s136, %s137
      %p146 = scmp.eq.s32.totalorder %s21, 0
      %p147 = por %p145, %p146
      %p148 = scmp.ne.s32.totalorder %s136, %s137
      %p149 = scmp.eq.s32.totalorder %s22, 1
      %p150 = por %p148, %p149
      %p152 = scmp.ne.s32.totalorder %s137, %s151
      %p153 = scmp.eq.s32.totalorder %s22, 0
      %p154 = por %p152, %p153
      %s156 = sadd.s32 %s155, 1
      %p159 = scmp.eq.s32.totalorder %s16, 1
      %p160 = scmp.ne.s32.totalorder %s155, %s157
      %p161 = scmp.eq.s32.totalorder %s16, 0
      %p162 = por %p160, %p161
      %p163 = scmp.ne.s32.totalorder %s155, %s157
      %p164 = scmp.eq.s32.totalorder %s21, 1
      %p165 = por %p163, %p164
      %p166 = scmp.ne.s32.totalorder %s157, %s158
      %p167 = scmp.eq.s32.totalorder %s21, 0
      %p168 = por %p166, %p167
      %p169 = scmp.ne.s32.totalorder %s157, %s158
      %p170 = scmp.eq.s32.totalorder %s22, 1
      %p171 = por %p169, %p170
      %p173 = scmp.ne.s32.totalorder %s158, %s172
      %p174 = scmp.eq.s32.totalorder %s22, 0
      %p175 = por %p173, %p174
      %s176 = ssub.s32 %s16, %s23
      %p177 = scmp.eq.s32.totalorder %s176, 0
      %s179 = sadd.s32 %s178, 1
      %s180 = scalar_select %p177, %s178, %s179
      %p183 = pneg %p177
      %p184 = scmp.eq.s32.totalorder %s16, 1
      %p185 = por %p183, %p184
      %p186 = scmp.ne.s32.totalorder %s178, %s181
      %p187 = scmp.eq.s32.totalorder %s16, 0
      %p188 = por %p186, %p187
      %p189 = scmp.ne.s32.totalorder %s178, %s181
      %p190 = scmp.eq.s32.totalorder %s21, 1
      %p191 = por %p189, %p190
      %p192 = scmp.ne.s32.totalorder %s181, %s182
      %p193 = scmp.eq.s32.totalorder %s21, 0
      %p194 = por %p192, %p193
      %p195 = scmp.ne.s32.totalorder %s181, %s182
      %p196 = scmp.eq.s32.totalorder %s22, 1
      %p197 = por %p195, %p196
      %p199 = scmp.ne.s32.totalorder %s182, %s198
      %p200 = scmp.eq.s32.totalorder %s22, 0
      %p201 = por %p199, %p200
      %p202 = scmp.le.s32.totalorder 1, %s16
      %p203 = scmp.lt.s32.totalorder %s16, 3
      %p204 = pnand %p202, %p203
      %p205 = pneg %p204
      // Predicated region
      $region9: #{mlp_forward.1} parent=5 // pred_check
        _
      $region10: #{mlp_forward.1} parent=5 // pred_check_branch
        %207 = sbr.rel (%p204) target = $region12
      $region11: #{mlp_forward.1} parent=5 // pred_region
        %s208 = ssub.s32 %s16, 1
        // Predicated region
        $region13: #{mlp_forward.1} parent=11 // pred_check
          %p209 = pneg %p63
        $region14: #{mlp_forward.1} parent=11 // pred_check_branch
          %211 = sbr.rel (%p209) target = $region16
        $region15: #{mlp_forward.1} parent=11 // pred_region
          _
        $region16: #{mlp_forward.1} parent=11 // pred_fallthru
          _
        // Predicated region
        $region17: #{mlp_forward.1} parent=11 // pred_check
          %p212 = pneg %p84
        $region18: #{mlp_forward.1} parent=11 // pred_check_branch
          %214 = sbr.rel (%p212) target = $region20
        $region19: #{mlp_forward.1} parent=11 // pred_region
          _
        $region20: #{mlp_forward.1} parent=11 // pred_fallthru
          _
        // Predicated region
        $region21: #{mlp_forward.1} parent=11 // pred_check
          %p215 = pneg %p105
        $region22: #{mlp_forward.1} parent=11 // pred_check_branch
          %217 = sbr.rel (%p215) target = $region24
        $region23: #{mlp_forward.1} parent=11 // pred_region
          _
        $region24: #{mlp_forward.1} parent=11 // pred_fallthru
          _
        // Predicated region
        $region25: #{mlp_forward.1} parent=11 // pred_check
          %p218 = pneg %p126
        $region26: #{mlp_forward.1} parent=11 // pred_check_branch
          %220 = sbr.rel (%p218) target = $region28
        $region27: #{mlp_forward.1} parent=11 // pred_region
          _
        $region28: #{mlp_forward.1} parent=11 // pred_fallthru
          _
        // Predicated region
        $region29: #{mlp_forward.1} parent=11 // pred_check
          %p221 = pneg %p147
        $region30: #{mlp_forward.1} parent=11 // pred_check_branch
          %223 = sbr.rel (%p221) target = $region32
        $region31: #{mlp_forward.1} parent=11 // pred_region
          _
        $region32: #{mlp_forward.1} parent=11 // pred_fallthru
          _
        // Predicated region
        $region33: #{mlp_forward.1} parent=11 // pred_check
          %p224 = pneg %p168
        $region34: #{mlp_forward.1} parent=11 // pred_check_branch
          %226 = sbr.rel (%p224) target = $region36
        $region35: #{mlp_forward.1} parent=11 // pred_region
          _
        $region36: #{mlp_forward.1} parent=11 // pred_fallthru
          _
      $region12: #{mlp_forward.1} parent=5 // pred_fallthru
        _
      %p227 = scmp.lt.s32.totalorder %s16, 2
      // Predicated region
      $region37: #{mlp_forward.1} parent=5 // pred_check
        %p228 = pneg %p227
      $region38: #{mlp_forward.1} parent=5 // pred_check_branch
        %230 = sbr.rel (%p228) target = $region40
      $region39: #{mlp_forward.1} parent=5 // pred_region
        // Predicated region
        $region41: #{mlp_forward.1} parent=39 // pred_check
          %p231 = pneg %p36
        $region42: #{mlp_forward.1} parent=39 // pred_check_branch
          %233 = sbr.rel (%p231) target = $region44
        $region43: #{mlp_forward.1} parent=39 // pred_region
          %p234 = scmp.lt.s32.totalorder %s16, 1
          %s235 = scalar_select %p234, %s16, 1
          %s236 = smul.addr %s235, 8
          %s237 = scalar_lea.vmem %s0, %s236
        $region44: #{mlp_forward.1} parent=39 // pred_fallthru
          _
      $region40: #{mlp_forward.1} parent=5 // pred_fallthru
        _
      %p238 = scmp.le.s32.totalorder 1, %s16
      %p239 = scmp.lt.s32.totalorder %s16, 3
      %p240 = pnand %p238, %p239
      %p241 = pneg %p240
      // Predicated region
      $region45: #{mlp_forward.1} parent=5 // pred_check
        _
      $region46: #{mlp_forward.1} parent=5 // pred_check_branch
        %243 = sbr.rel (%p240) target = $region48
      $region47: #{mlp_forward.1} parent=5 // pred_region
        %s244 = ssub.s32 %s16, 1
        %p245 = scmp.lt.s32.totalorder %s21, 1
        %s246 = scalar_select %p245, %s21, 1
        %s247 = smul.addr %s246, 8
        %s248 = scalar_lea.vmem %s0, %s247
        %p249 = pneg %p42
        %p250 = pneg %p39
        %p251 = pneg %p63
        %p252 = pneg %p60
        %p253 = pneg %p84
        %p254 = pneg %p81
        %p255 = pneg %p105
        %p256 = pneg %p102
        %p257 = pneg %p126
        %p258 = pneg %p123
        %p259 = pneg %p147
        %p260 = pneg %p144
        %p261 = pneg %p168
        %p262 = pneg %p165
        %p263 = pneg %p194
        %p264 = pneg %p191
        %s265 = sand.u32 %s181, 1
        %s266 = scalar_lea.sflag [#allocation3], %s265
        %s267 = sand.u32 %s181, 1
        %s268 = smul.addr %s267, 2
        %s269 = scalar_lea.vmem [#allocation2], %s268
        %p270 = scmp.lt.s32.totalorder %s21, 1
        %s271 = scalar_select %p270, %s21, 1
        %s272 = smul.addr %s271, 8
        %s273 = scalar_lea.vmem %s0, %s272
        %v275 = vld [vmem:[%s273] sm:$0xff]
        %v276 = vpack.c.bf16 %v275, %v275
        %v277 = vld [vmem:[%s1] sm:$0xf]
        %v278 = vld [vmem:[%s1 + $0x4] sm:$0xf]
        %v279 = vld [vmem:[%s1 + $0x8] sm:$0xf]
        %v280 = vld [vmem:[%s1 + $0xc] sm:$0xf]
        %v281 = vld [vmem:[%s1 + $0x10] sm:$0xf]
        %v282 = vld [vmem:[%s1 + $0x14] sm:$0xf]
        %v283 = vld [vmem:[%s1 + $0x18] sm:$0xf]
        %v284 = vld [vmem:[%s1 + $0x1c] sm:$0xf]
        %v285 = vld [vmem:[%s4] sm:$0xff]
        %v286 = vld [vmem:[%s4 + $0x8] sm:$0xff]
        %v287 = vld [vmem:[%s4 + $0x10] sm:$0xff]
        %v288 = vld [vmem:[%s4 + $0x18] sm:$0xff]
        %v289 = vld [vmem:[%s4 + $0x20] sm:$0xff]
        %v290 = vld [vmem:[%s4 + $0x28] sm:$0xff]
        %v291 = vld [vmem:[%s4 + $0x30] sm:$0xff]
        %v292 = vld [vmem:[%s4 + $0x38] sm:$0xff]
        %294 = vset.pattern.permute.xlu0 0
        %295 = vperm.xlu0 %294, %v285
        %v296 = vpop.permute.xlu0 %295
        %299 = vset.pattern.permute.xlu0 0
        %300 = vperm.xlu0 %299, %v286
        %v301 = vpop.permute.xlu0 %300
        %304 = vset.pattern.permute.xlu0 0
        %305 = vperm.xlu0 %304, %v287
        %v306 = vpop.permute.xlu0 %305
        %309 = vset.pattern.permute.xlu0 0
        %310 = vperm.xlu0 %309, %v288
        %v311 = vpop.permute.xlu0 %310
        %314 = vset.pattern.permute.xlu0 0
        %315 = vperm.xlu0 %314, %v289
        %v316 = vpop.permute.xlu0 %315
        %319 = vset.pattern.permute.xlu0 0
        %320 = vperm.xlu0 %319, %v290
        %v321 = vpop.permute.xlu0 %320
        %324 = vset.pattern.permute.xlu0 0
        %325 = vperm.xlu0 %324, %v291
        %v326 = vpop.permute.xlu0 %325
        %329 = vset.pattern.permute.xlu0 0
        %330 = vperm.xlu0 %329, %v292
        %v331 = vpop.permute.xlu0 %330
        %v341 = vunpack.c.l.b16 %v277
        %v342 = vunpack.c.l.b16 %v278
        %v343 = vunpack.c.l.b16 %v279
        %v344 = vunpack.c.l.b16 %v280
        %v345 = vunpack.c.l.b16 %v281
        %v346 = vunpack.c.l.b16 %v282
        %v347 = vunpack.c.l.b16 %v283
        %v348 = vunpack.c.l.b16 %v284
        %v349 = vpack.c.b16 %v342, %v341
        %v350 = vpack.c.b16 %v344, %v343
        %v351 = vpack.c.b16 %v346, %v345
        %v352 = vpack.c.b16 %v348, %v347
        %vm353 = vcmask 64512
        %v355 = vsel %vm353, %v349, 0
        %v358 = vsel %vm353, %v350, 0
        %v361 = vsel %vm353, %v351, 0
        %v364 = vsel %vm353, %v352, 0
        %vm366 = vcmask 1043456
        %v368 = vsel %vm366, %v276, 0
        %370 = vmatpush.bf16.msra.mxu0 0
        %371 = vmatpush.bf16.msra.mxu0 0
        %372 = vmatpush.bf16.msra.mxu0 0
        %373 = vmatpush.bf16.msra.mxu0 0
        %374 = vmatpush.bf16.msra.mxu0 0
        %375 = vmatpush.bf16.msra.mxu0 0
        %376 = vmatpush.bf16.msra.mxu0 0
        %377 = vmatpush.bf16.msra.mxu0 %v368
        %378 = vmatmul.bf16.gmra.mxu0 %v355
        %v379 = vpop.f32.mrf.mxu0
        %v380 = vadd.f32 %v296, %v379
        %v381 = vpop.f32.mrf.mxu0
        %v382 = vadd.f32 %v301, %v381
        %383 = vmatmul.bf16.gmra.mxu0 %v358
        %v384 = vpop.f32.mrf.mxu0
        %v385 = vadd.f32 %v306, %v384
        %v386 = vpop.f32.mrf.mxu0
        %v387 = vadd.f32 %v311, %v386
        %388 = vmatmul.bf16.gmra.mxu0 %v361
        %v389 = vpop.f32.mrf.mxu0
        %v390 = vadd.f32 %v316, %v389
        %v391 = vpop.f32.mrf.mxu0
        %v392 = vadd.f32 %v321, %v391
        %393 = vmatmul.bf16.gmra.mxu0 %v364
        %v394 = vpop.f32.mrf.mxu0
        %v395 = vadd.f32 %v326, %v394
        %v396 = vpop.f32.mrf.mxu0
        %v397 = vadd.f32 %v331, %v396
        %398 = vdwg.mxu0
        %v399 = vmax.f32 %v380, 0.0
        %v400 = vmax.f32 %v382, 0.0
        %v401 = vmax.f32 %v385, 0.0
        %v402 = vmax.f32 %v387, 0.0
        %v403 = vmax.f32 %v390, 0.0
        %v404 = vmax.f32 %v392, 0.0
        %v405 = vmax.f32 %v395, 0.0
        %v406 = vmax.f32 %v397, 0.0
        %v407 = vld [vmem:[%s2] sm:$0xf]
        %v408 = vld [vmem:[%s2 + $0x4] sm:$0xf]
        %v409 = vld [vmem:[%s2 + $0x8] sm:$0xf]
        %v410 = vld [vmem:[%s2 + $0xc] sm:$0xf]
        %v411 = vld [vmem:[%s2 + $0x10] sm:$0xf]
        %v412 = vld [vmem:[%s2 + $0x14] sm:$0xf]
        %v413 = vld [vmem:[%s2 + $0x18] sm:$0xf]
        %v414 = vld [vmem:[%s2 + $0x1c] sm:$0xf]
        %v415 = vld [vmem:[%s2 + $0x20] sm:$0xf]
        %v416 = vld [vmem:[%s2 + $0x24] sm:$0xf]
        %v417 = vld [vmem:[%s2 + $0x28] sm:$0xf]
        %v418 = vld [vmem:[%s2 + $0x2c] sm:$0xf]
        %v419 = vld [vmem:[%s2 + $0x30] sm:$0xf]
        %v420 = vld [vmem:[%s2 + $0x34] sm:$0xf]
        %v421 = vld [vmem:[%s2 + $0x38] sm:$0xf]
        %v422 = vld [vmem:[%s2 + $0x3c] sm:$0xf]
        %v423 = vld [vmem:[%s2 + $0x40] sm:$0xf]
        %v424 = vld [vmem:[%s2 + $0x44] sm:$0xf]
        %v425 = vld [vmem:[%s2 + $0x48] sm:$0xf]
        %v426 = vld [vmem:[%s2 + $0x4c] sm:$0xf]
        %v427 = vld [vmem:[%s2 + $0x50] sm:$0xf]
        %v428 = vld [vmem:[%s2 + $0x54] sm:$0xf]
        %v429 = vld [vmem:[%s2 + $0x58] sm:$0xf]
        %v430 = vld [vmem:[%s2 + $0x5c] sm:$0xf]
        %v431 = vld [vmem:[%s2 + $0x60] sm:$0xf]
        %v432 = vld [vmem:[%s2 + $0x64] sm:$0xf]
        %v433 = vld [vmem:[%s2 + $0x68] sm:$0xf]
        %v434 = vld [vmem:[%s2 + $0x6c] sm:$0xf]
        %v435 = vld [vmem:[%s2 + $0x70] sm:$0xf]
        %v436 = vld [vmem:[%s2 + $0x74] sm:$0xf]
        %v437 = vld [vmem:[%s2 + $0x78] sm:$0xf]
        %v438 = vld [vmem:[%s2 + $0x7c] sm:$0xf]
        %v439 = vpack.c.bf16 %v400, %v399
        %v440 = vpack.c.bf16 %v402, %v401
        %v441 = vpack.c.bf16 %v404, %v403
        %v442 = vpack.c.bf16 %v406, %v405
        %v443 = vld [vmem:[%s5] sm:$0xff]
        %v444 = vld [vmem:[%s5 + $0x8] sm:$0xff]
        %v445 = vld [vmem:[%s5 + $0x10] sm:$0xff]
        %v446 = vld [vmem:[%s5 + $0x18] sm:$0xff]
        %v447 = vld [vmem:[%s5 + $0x20] sm:$0xff]
        %v448 = vld [vmem:[%s5 + $0x28] sm:$0xff]
        %v449 = vld [vmem:[%s5 + $0x30] sm:$0xff]
        %v450 = vld [vmem:[%s5 + $0x38] sm:$0xff]
        %v451 = vld [vmem:[%s5 + $0x40] sm:$0xff]
        %v452 = vld [vmem:[%s5 + $0x48] sm:$0xff]
        %v453 = vld [vmem:[%s5 + $0x50] sm:$0xff]
        %v454 = vld [vmem:[%s5 + $0x58] sm:$0xff]
        %v455 = vld [vmem:[%s5 + $0x60] sm:$0xff]
        %v456 = vld [vmem:[%s5 + $0x68] sm:$0xff]
        %v457 = vld [vmem:[%s5 + $0x70] sm:$0xff]
        %v458 = vld [vmem:[%s5 + $0x78] sm:$0xff]
        %v459 = vld [vmem:[%s5 + $0x80] sm:$0xff]
        %v460 = vld [vmem:[%s5 + $0x88] sm:$0xff]
        %v461 = vld [vmem:[%s5 + $0x90] sm:$0xff]
        %v462 = vld [vmem:[%s5 + $0x98] sm:$0xff]
        %v463 = vld [vmem:[%s5 + $0xa0] sm:$0xff]
        %v464 = vld [vmem:[%s5 + $0xa8] sm:$0xff]
        %v465 = vld [vmem:[%s5 + $0xb0] sm:$0xff]
        %v466 = vld [vmem:[%s5 + $0xb8] sm:$0xff]
        %v467 = vld [vmem:[%s5 + $0xc0] sm:$0xff]
        %v468 = vld [vmem:[%s5 + $0xc8] sm:$0xff]
        %v469 = vld [vmem:[%s5 + $0xd0] sm:$0xff]
        %v470 = vld [vmem:[%s5 + $0xd8] sm:$0xff]
        %v471 = vld [vmem:[%s5 + $0xe0] sm:$0xff]
        %v472 = vld [vmem:[%s5 + $0xe8] sm:$0xff]
        %v473 = vld [vmem:[%s5 + $0xf0] sm:$0xff]
        %v474 = vld [vmem:[%s5 + $0xf8] sm:$0xff]
        %476 = vset.pattern.permute.xlu0 0
        %477 = vperm.xlu0 %476, %v443
        %v478 = vpop.permute.xlu0 %477
        %481 = vset.pattern.permute.xlu0 0
        %482 = vperm.xlu0 %481, %v444
        %v483 = vpop.permute.xlu0 %482
        %486 = vset.pattern.permute.xlu0 0
        %487 = vperm.xlu0 %486, %v445
        %v488 = vpop.permute.xlu0 %487
        %491 = vset.pattern.permute.xlu0 0
        %492 = vperm.xlu0 %491, %v446
        %v493 = vpop.permute.xlu0 %492
        %496 = vset.pattern.permute.xlu0 0
        %497 = vperm.xlu0 %496, %v447
        %v498 = vpop.permute.xlu0 %497
        %501 = vset.pattern.permute.xlu0 0
        %502 = vperm.xlu0 %501, %v448
        %v503 = vpop.permute.xlu0 %502
        %506 = vset.pattern.permute.xlu0 0
        %507 = vperm.xlu0 %506, %v449
        %v508 = vpop.permute.xlu0 %507
        %511 = vset.pattern.permute.xlu0 0
        %512 = vperm.xlu0 %511, %v450
        %v513 = vpop.permute.xlu0 %512
        %516 = vset.pattern.permute.xlu0 0
        %517 = vperm.xlu0 %516, %v451
        %v518 = vpop.permute.xlu0 %517
        %521 = vset.pattern.permute.xlu0 0
        %522 = vperm.xlu0 %521, %v452
        %v523 = vpop.permute.xlu0 %522
        %526 = vset.pattern.permute.xlu0 0
        %527 = vperm.xlu0 %526, %v453
        %v528 = vpop.permute.xlu0 %527
        %531 = vset.pattern.permute.xlu0 0
        %532 = vperm.xlu0 %531, %v454
        %v533 = vpop.permute.xlu0 %532
        %536 = vset.pattern.permute.xlu0 0
        %537 = vperm.xlu0 %536, %v455
        %v538 = vpop.permute.xlu0 %537
        %541 = vset.pattern.permute.xlu0 0
        %542 = vperm.xlu0 %541, %v456
        %v543 = vpop.permute.xlu0 %542
        %546 = vset.pattern.permute.xlu0 0
        %547 = vperm.xlu0 %546, %v457
        %v548 = vpop.permute.xlu0 %547
        %551 = vset.pattern.permute.xlu0 0
        %552 = vperm.xlu0 %551, %v458
        %v553 = vpop.permute.xlu0 %552
        %556 = vset.pattern.permute.xlu0 0
        %557 = vperm.xlu0 %556, %v459
        %v558 = vpop.permute.xlu0 %557
        %561 = vset.pattern.permute.xlu0 0
        %562 = vperm.xlu0 %561, %v460
        %v563 = vpop.permute.xlu0 %562
        %566 = vset.pattern.permute.xlu0 0
        %567 = vperm.xlu0 %566, %v461
        %v568 = vpop.permute.xlu0 %567
        %571 = vset.pattern.permute.xlu0 0
        %572 = vperm.xlu0 %571, %v462
        %v573 = vpop.permute.xlu0 %572
        %576 = vset.pattern.permute.xlu0 0
        %577 = vperm.xlu0 %576, %v463
        %v578 = vpop.permute.xlu0 %577
        %581 = vset.pattern.permute.xlu0 0
        %582 = vperm.xlu0 %581, %v464
        %v583 = vpop.permute.xlu0 %582
        %586 = vset.pattern.permute.xlu0 0
        %587 = vperm.xlu0 %586, %v465
        %v588 = vpop.permute.xlu0 %587
        %591 = vset.pattern.permute.xlu0 0
        %592 = vperm.xlu0 %591, %v466
        %v593 = vpop.permute.xlu0 %592
        %596 = vset.pattern.permute.xlu0 0
        %597 = vperm.xlu0 %596, %v467
        %v598 = vpop.permute.xlu0 %597
        %601 = vset.pattern.permute.xlu0 0
        %602 = vperm.xlu0 %601, %v468
        %v603 = vpop.permute.xlu0 %602
        %606 = vset.pattern.permute.xlu0 0
        %607 = vperm.xlu0 %606, %v469
        %v608 = vpop.permute.xlu0 %607
        %611 = vset.pattern.permute.xlu0 0
        %612 = vperm.xlu0 %611, %v470
        %v613 = vpop.permute.xlu0 %612
        %616 = vset.pattern.permute.xlu0 0
        %617 = vperm.xlu0 %616, %v471
        %v618 = vpop.permute.xlu0 %617
        %621 = vset.pattern.permute.xlu0 0
        %622 = vperm.xlu0 %621, %v472
        %v623 = vpop.permute.xlu0 %622
        %626 = vset.pattern.permute.xlu0 0
        %627 = vperm.xlu0 %626, %v473
        %v628 = vpop.permute.xlu0 %627
        %631 = vset.pattern.permute.xlu0 0
        %632 = vperm.xlu0 %631, %v474
        %v633 = vpop.permute.xlu0 %632
        %v667 = vunpack.c.l.b16 %v407
        %v668 = vunpack.c.l.b16 %v408
        %v669 = vunpack.c.l.b16 %v409
        %v670 = vunpack.c.l.b16 %v410
        %v671 = vunpack.c.l.b16 %v411
        %v672 = vunpack.c.l.b16 %v412
        %v673 = vunpack.c.l.b16 %v413
        %v674 = vunpack.c.l.b16 %v414
        %v675 = vunpack.c.l.b16 %v415
        %v676 = vunpack.c.l.b16 %v416
        %v677 = vunpack.c.l.b16 %v417
        %v678 = vunpack.c.l.b16 %v418
        %v679 = vunpack.c.l.b16 %v419
        %v680 = vunpack.c.l.b16 %v420
        %v681 = vunpack.c.l.b16 %v421
        %v682 = vunpack.c.l.b16 %v422
        %v683 = vunpack.c.l.b16 %v423
        %v684 = vunpack.c.l.b16 %v424
        %v685 = vunpack.c.l.b16 %v425
        %v686 = vunpack.c.l.b16 %v426
        %v687 = vunpack.c.l.b16 %v427
        %v688 = vunpack.c.l.b16 %v428
        %v689 = vunpack.c.l.b16 %v429
        %v690 = vunpack.c.l.b16 %v430
        %v691 = vunpack.c.l.b16 %v431
        %v692 = vunpack.c.l.b16 %v432
        %v693 = vunpack.c.l.b16 %v433
        %v694 = vunpack.c.l.b16 %v434
        %v695 = vunpack.c.l.b16 %v435
        %v696 = vunpack.c.l.b16 %v436
        %v697 = vunpack.c.l.b16 %v437
        %v698 = vunpack.c.l.b16 %v438
        %v699 = vpack.c.b16 %v668, %v667
        %v700 = vpack.c.b16 %v670, %v669
        %v701 = vpack.c.b16 %v672, %v671
        %v702 = vpack.c.b16 %v674, %v673
        %v703 = vpack.c.b16 %v676, %v675
        %v704 = vpack.c.b16 %v678, %v677
        %v705 = vpack.c.b16 %v680, %v679
        %v706 = vpack.c.b16 %v682, %v681
        %v707 = vpack.c.b16 %v684, %v683
        %v708 = vpack.c.b16 %v686, %v685
        %v709 = vpack.c.b16 %v688, %v687
        %v710 = vpack.c.b16 %v690, %v689
        %v711 = vpack.c.b16 %v692, %v691
        %v712 = vpack.c.b16 %v694, %v693
        %v713 = vpack.c.b16 %v696, %v695
        %v714 = vpack.c.b16 %v698, %v697
        %vm715 = vcmask 523264
        %v717 = vsel %vm715, %v699, 0
        %v720 = vsel %vm715, %v700, 0
        %v723 = vsel %vm715, %v701, 0
        %v726 = vsel %vm715, %v702, 0
        %v729 = vsel %vm715, %v703, 0
        %v732 = vsel %vm715, %v704, 0
        %v735 = vsel %vm715, %v705, 0
        %v738 = vsel %vm715, %v706, 0
        %v741 = vsel %vm715, %v707, 0
        %v744 = vsel %vm715, %v708, 0
        %v747 = vsel %vm715, %v709, 0
        %v750 = vsel %vm715, %v710, 0
        %v753 = vsel %vm715, %v711, 0
        %v756 = vsel %vm715, %v712, 0
        %v759 = vsel %vm715, %v713, 0
        %v762 = vsel %vm715, %v714, 0
        %764 = vmatpush.bf16.msra.mxu0 0
        %765 = vmatpush.bf16.msra.mxu0 0
        %766 = vmatpush.bf16.msra.mxu0 0
        %767 = vmatpush.bf16.msra.mxu0 0
        %768 = vmatpush.bf16.msra.mxu0 %v442
        %769 = vmatpush.bf16.msra.mxu0 %v441
        %770 = vmatpush.bf16.msra.mxu0 %v440
        %771 = vmatpush.bf16.msra.mxu0 %v439
        %772 = vmatmul.bf16.gmra.mxu0 %v717
        %v773 = vpop.f32.mrf.mxu0
        %v774 = vadd.f32 %v478, %v773
        %v775 = vpop.f32.mrf.mxu0
        %v776 = vadd.f32 %v483, %v775
        %777 = vmatmul.bf16.gmra.mxu0 %v720
        %v778 = vpop.f32.mrf.mxu0
        %v779 = vadd.f32 %v488, %v778
        %v780 = vpop.f32.mrf.mxu0
        %v781 = vadd.f32 %v493, %v780
        %782 = vmatmul.bf16.gmra.mxu0 %v723
        %v783 = vpop.f32.mrf.mxu0
        %v784 = vadd.f32 %v498, %v783
        %v785 = vpop.f32.mrf.mxu0
        %v786 = vadd.f32 %v503, %v785
        %787 = vmatmul.bf16.gmra.mxu0 %v726
        %v788 = vpop.f32.mrf.mxu0
        %v789 = vadd.f32 %v508, %v788
        %v790 = vpop.f32.mrf.mxu0
        %v791 = vadd.f32 %v513, %v790
        %792 = vmatmul.bf16.gmra.mxu0 %v729
        %v793 = vpop.f32.mrf.mxu0
        %v794 = vadd.f32 %v518, %v793
        %v795 = vpop.f32.mrf.mxu0
        %v796 = vadd.f32 %v523, %v795
        %797 = vmatmul.bf16.gmra.mxu0 %v732
        %v798 = vpop.f32.mrf.mxu0
        %v799 = vadd.f32 %v528, %v798
        %v800 = vpop.f32.mrf.mxu0
        %v801 = vadd.f32 %v533, %v800
        %802 = vmatmul.bf16.gmra.mxu0 %v735
        %v803 = vpop.f32.mrf.mxu0
        %v804 = vadd.f32 %v538, %v803
        %v805 = vpop.f32.mrf.mxu0
        %v806 = vadd.f32 %v543, %v805
        %807 = vmatmul.bf16.gmra.mxu0 %v738
        %v808 = vpop.f32.mrf.mxu0
        %v809 = vadd.f32 %v548, %v808
        %v810 = vpop.f32.mrf.mxu0
        %v811 = vadd.f32 %v553, %v810
        %812 = vmatmul.bf16.gmra.mxu0 %v741
        %v813 = vpop.f32.mrf.mxu0
        %v814 = vadd.f32 %v558, %v813
        %v815 = vpop.f32.mrf.mxu0
        %v816 = vadd.f32 %v563, %v815
        %817 = vmatmul.bf16.gmra.mxu0 %v744
        %v818 = vpop.f32.mrf.mxu0
        %v819 = vadd.f32 %v568, %v818
        %v820 = vpop.f32.mrf.mxu0
        %v821 = vadd.f32 %v573, %v820
        %822 = vmatmul.bf16.gmra.mxu0 %v747
        %v823 = vpop.f32.mrf.mxu0
        %v824 = vadd.f32 %v578, %v823
        %v825 = vpop.f32.mrf.mxu0
        %v826 = vadd.f32 %v583, %v825
        %827 = vmatmul.bf16.gmra.mxu0 %v750
        %v828 = vpop.f32.mrf.mxu0
        %v829 = vadd.f32 %v588, %v828
        %v830 = vpop.f32.mrf.mxu0
        %v831 = vadd.f32 %v593, %v830
        %832 = vmatmul.bf16.gmra.mxu0 %v753
        %v833 = vpop.f32.mrf.mxu0
        %v834 = vadd.f32 %v598, %v833
        %v835 = vpop.f32.mrf.mxu0
        %v836 = vadd.f32 %v603, %v835
        %837 = vmatmul.bf16.gmra.mxu0 %v756
        %v838 = vpop.f32.mrf.mxu0
        %v839 = vadd.f32 %v608, %v838
        %v840 = vpop.f32.mrf.mxu0
        %v841 = vadd.f32 %v613, %v840
        %842 = vmatmul.bf16.gmra.mxu0 %v759
        %v843 = vpop.f32.mrf.mxu0
        %v844 = vadd.f32 %v618, %v843
        %v845 = vpop.f32.mrf.mxu0
        %v846 = vadd.f32 %v623, %v845
        %847 = vmatmul.bf16.gmra.mxu0 %v762
        %v848 = vpop.f32.mrf.mxu0
        %v849 = vadd.f32 %v628, %v848
        %v850 = vpop.f32.mrf.mxu0
        %v851 = vadd.f32 %v633, %v850
        %852 = vdwg.mxu0
        %v853 = vmax.f32 %v774, 0.0
        %v854 = vmax.f32 %v776, 0.0
        %v855 = vmax.f32 %v779, 0.0
        %v856 = vmax.f32 %v781, 0.0
        %v857 = vmax.f32 %v784, 0.0
        %v858 = vmax.f32 %v786, 0.0
        %v859 = vmax.f32 %v789, 0.0
        %v860 = vmax.f32 %v791, 0.0
        %v861 = vmax.f32 %v794, 0.0
        %v862 = vmax.f32 %v796, 0.0
        %v863 = vmax.f32 %v799, 0.0
        %v864 = vmax.f32 %v801, 0.0
        %v865 = vmax.f32 %v804, 0.0
        %v866 = vmax.f32 %v806, 0.0
        %v867 = vmax.f32 %v809, 0.0
        %v868 = vmax.f32 %v811, 0.0
        %v869 = vmax.f32 %v814, 0.0
        %v870 = vmax.f32 %v816, 0.0
        %v871 = vmax.f32 %v819, 0.0
        %v872 = vmax.f32 %v821, 0.0
        %v873 = vmax.f32 %v824, 0.0
        %v874 = vmax.f32 %v826, 0.0
        %v875 = vmax.f32 %v829, 0.0
        %v876 = vmax.f32 %v831, 0.0
        %v877 = vmax.f32 %v834, 0.0
        %v878 = vmax.f32 %v836, 0.0
        %v879 = vmax.f32 %v839, 0.0
        %v880 = vmax.f32 %v841, 0.0
        %v881 = vmax.f32 %v844, 0.0
        %v882 = vmax.f32 %v846, 0.0
        %v883 = vmax.f32 %v849, 0.0
        %v884 = vmax.f32 %v851, 0.0
        %v885 = vld [vmem:[%s3] sm:$0x3]
        %v886 = vpack.c.bf16 %v854, %v853
        %v887 = vpack.c.bf16 %v856, %v855
        %v888 = vpack.c.bf16 %v858, %v857
        %v889 = vpack.c.bf16 %v860, %v859
        %v890 = vpack.c.bf16 %v862, %v861
        %v891 = vpack.c.bf16 %v864, %v863
        %v892 = vpack.c.bf16 %v866, %v865
        %v893 = vpack.c.bf16 %v868, %v867
        %v894 = vpack.c.bf16 %v870, %v869
        %v895 = vpack.c.bf16 %v872, %v871
        %v896 = vpack.c.bf16 %v874, %v873
        %v897 = vpack.c.bf16 %v876, %v875
        %v898 = vpack.c.bf16 %v878, %v877
        %v899 = vpack.c.bf16 %v880, %v879
        %v900 = vpack.c.bf16 %v882, %v881
        %v901 = vpack.c.bf16 %v884, %v883
        %v902 = vld [vmem:[%s6] sm:$0x3]
        %904 = vset.pattern.permute.xlu0 0
        %905 = vperm.xlu0 %904, %v902
        %v906 = vpop.permute.xlu0 %905
        %909 = vst [vmem:[#allocation1] ss:$9 sm:$0xff] %v885
        %v910 = vld [vmem:[#allocation1] sm:$0xff]
        %v911 = vld [vmem:[#allocation1 + $0x9] sm:$0xff]
        %914 = vmatpush.bf16.msra.mxu0 %v893
        %915 = vmatpush.bf16.msra.mxu0 %v892
        %916 = vmatpush.bf16.msra.mxu0 %v891
        %917 = vmatpush.bf16.msra.mxu0 %v890
        %918 = vmatpush.bf16.msra.mxu0 %v889
        %919 = vmatpush.bf16.msra.mxu0 %v888
        %920 = vmatpush.bf16.msra.mxu0 %v887
        %921 = vmatpush.bf16.msra.mxu0 %v886
        %922 = vmatmul.bf16.gmra.mxu0 %v910
        %v923 = vpop.f32.mrf.mxu0
        %v924 = vadd.f32 %v906, %v923
        %v925 = vpop.f32.mrf.mxu0
        %926 = vdwg.mxu0
        %927 = vmatpush.bf16.msra.mxu0 %v901
        %928 = vmatpush.bf16.msra.mxu0 %v900
        %929 = vmatpush.bf16.msra.mxu0 %v899
        %930 = vmatpush.bf16.msra.mxu0 %v898
        %931 = vmatpush.bf16.msra.mxu0 %v897
        %932 = vmatpush.bf16.msra.mxu0 %v896
        %933 = vmatpush.bf16.msra.mxu0 %v895
        %934 = vmatpush.bf16.msra.mxu0 %v894
        %935 = vmatmul.bf16.gmra.mxu0 %v911
        %v936 = vpop.f32.mrf.mxu0
        %v937 = vadd.f32 %v924, %v936
        %v938 = vpop.f32.mrf.mxu0
        %939 = vdwg.mxu0
        %940 = vst [vmem:[%s269] sm:$0x3] %v937
        %s941 = sand.u32 %s181, 1
        %s942 = scalar_lea.sflag [#allocation3], %s941
        %s943 = sand.u32 %s181, 1
        %s944 = smul.addr %s943, 2
        %s945 = scalar_lea.vmem [#allocation2], %s944
        // Predicated region
        $region49: #{mlp_forward.1} parent=47 // pred_check
          %p946 = pneg %p191
        $region50: #{mlp_forward.1} parent=47 // pred_check_branch
          %948 = sbr.rel (%p946) target = $region52
        $region51: #{mlp_forward.1} parent=47 // pred_region
          %950 = vsyncadd %s942, 0
          %s951 = smul.addr %s21, 2
          %s952 = scalar_lea.hbm %s7, %s951
          %s954 = sshll.u32 %s945, 4
          %s955 = int_to_ptr.vmem [resolvable:$true] %s954
          %s956 = sshll.u32 %s952, 4
          %s957 = int_to_ptr.hbm [resolvable:$true] %s956
          %959 = dma.vmem_to_hbm [thread:$0]  %s955, 32, %s957, %s942
        $region52: #{mlp_forward.1} parent=47 // pred_fallthru
          _
      $region48: #{mlp_forward.1} parent=5 // pred_fallthru
        _
      %p960 = scmp.le.s32.totalorder 2, %s16
      // Predicated region
      $region53: #{mlp_forward.1} parent=5 // pred_check
        %p961 = pneg %p960
      $region54: #{mlp_forward.1} parent=5 // pred_check_branch
        %963 = sbr.rel (%p961) target = $region56
      $region55: #{mlp_forward.1} parent=5 // pred_region
        %s964 = ssub.s32 %s16, 2
        // Predicated region
        $region57: #{mlp_forward.1} parent=55 // pred_check
          %p965 = pneg %p197
        $region58: #{mlp_forward.1} parent=55 // pred_check_branch
          %967 = sbr.rel (%p965) target = $region60
        $region59: #{mlp_forward.1} parent=55 // pred_region
          %s968 = sand.u32 %s182, 1
          %s969 = scalar_lea.sflag [#allocation3], %s968
          %s970 = sand.u32 %s182, 1
          %s971 = smul.addr %s970, 2
          %s972 = scalar_lea.vmem [#allocation2], %s971
          %974 = dma.done %s969, 32
        $region60: #{mlp_forward.1} parent=55 // pred_fallthru
          _
      $region56: #{mlp_forward.1} parent=5 // pred_fallthru
        _
    $region6: #{mlp_forward.1} parent=1 // loop_footer
      %s20 = sadd.s32 1, %s16
    $region7: #{mlp_forward.1} parent=1 // loop_footer_branch
      %15 = sbr.rel target = $region3
    $region8: #{mlp_forward.1} parent=1 // loop_exit
      _
    %975 = vsyncpa [#allocation3], 1
    %s976 = scalar_lea.sflag [#allocation3], 1
    %977 = vsyncpa %s976, 1

</llo_original>
